<compile_context>
chip_gen: v6e
topology: v6e:2x2x1
jax: 0.10.0
libtpu: 0.0.40
codegen_flags: <defaults>
</compile_context>

<pallas_src>
import jax
import jax.numpy as jnp
from jax.experimental import pallas as pl
from jax.experimental.pallas import tpu as pltpu

_MiB = 1024 * 1024


def _round_up(x, m):
    return ((x + m - 1) // m) * m


def _vmem_cap_bytes():
    """Physical VMEM minus headroom for Mosaic internal scratch.

    v5e/v6e: 128 MiB -> ~112 MiB budget; v7x: 64 MiB -> ~48 MiB budget.
    Falls back to the conservative (v7x) number if the query is unavailable.
    """
    try:
        phys = pltpu.get_tpu_info().vmem_capacity_bytes
    except Exception:
        phys = 64 * _MiB
    return max(phys - 16 * _MiB, 32 * _MiB)


def _choose_tm(M, Kp, Dp, in_bytes, w_bytes, out_bytes, vmem_cap):
    """Largest M tile (multiple of 8, >=2 tiles, <=1024) that fits the VMEM cap."""
    if M <= 8:
        return 8
    # >= 2 tiles so the "parallel" M axis can shard across both v7x TensorCores.
    tm = min(1024, _round_up((M + 1) // 2, 8))
    while tm > 8:
        est = (2 * tm * Kp * in_bytes      # patches tile (double buffered)
               + 2 * Kp * Dp * w_bytes     # resident weight (+1 buffer of slack)
               + 2 * Dp * 4                # bias
               + 2 * tm * Dp * out_bytes)  # output tile (double buffered)
        if 2 * est <= vmem_cap:
            break
        tm = max(_round_up(tm // 2, 8), 8)
    return tm


def _patch_embed_kernel(p_ref, w_ref, b_ref, o_ref):
    # p_ref: (tm, Kp)  tile of flattened patches (compute dtype)
    # w_ref: (Kp, Dp)  full projection matrix, resident in VMEM (constant index)
    # b_ref: (1,  Dp)  conv bias (f32)
    # o_ref: (tm, Dp)  output tile
    acc = jnp.dot(p_ref[...], w_ref[...], preferred_element_type=jnp.float32)
    o_ref[...] = (acc + b_ref[...]).astype(o_ref.dtype)


def _patch_embed_matmul(patches, w, b, *, tm, out_dtype, vmem_cap):
    # TODO(synk): if Kp*Dp ever exceeded the VMEM budget (never the case for a
    # patch embed), reintroduce a K grid axis with a resident f32 accumulator.
    Mp, Kp = patches.shape
    _, Dp = w.shape

    in_bytes = patches.dtype.itemsize
    w_bytes = w.dtype.itemsize
    out_bytes = jnp.dtype(out_dtype).itemsize
    est = (2 * tm * Kp * in_bytes
           + 2 * Kp * Dp * w_bytes
           + 2 * Dp * 4
           + 2 * tm * Dp * out_bytes)
    vmem_limit = int(min(max(2 * est, 32 * _MiB), vmem_cap))

    return pl.pallas_call(
        _patch_embed_kernel,
        out_shape=jax.ShapeDtypeStruct((Mp, Dp), out_dtype),
        grid_spec=pltpu.PrefetchScalarGridSpec(
            num_scalar_prefetch=0,
            grid=(Mp // tm,),
            in_specs=[
                pl.BlockSpec((tm, Kp), lambda i: (i, 0)),   # streamed patches
                pl.BlockSpec((Kp, Dp), lambda i: (0, 0)),   # resident weight
                pl.BlockSpec((1, Dp), lambda i: (0, 0)),    # resident bias
            ],
            out_specs=pl.BlockSpec((tm, Dp), lambda i: (i, 0)),
        ),
        compiler_params=pltpu.CompilerParams(
            dimension_semantics=("parallel",),
            vmem_limit_bytes=vmem_limit,
            # Let XLA fuse the wrapper-side transpose/pad/cast of `patches`
            # into the kernel's input DMA instead of materializing it in HBM.
            allow_input_fusion=[True, False, False],
        ),
    )(patches, w, b)


class EmbeddingsPallas:
    """JAX/Pallas equivalent of Embeddings(d_model, patches_size, in_channels, cnn=False).

    forward: x (B, C, H, W) NCHW  ->  (B, num_patches, d_model)
    """

    def __init__(self, d_model, patches_size, in_channels=1, *, key,
                 compute_dtype=jnp.bfloat16, out_dtype=None):
        self.d_model = d_model
        self.P = patches_size
        self.C = in_channels
        self.compute_dtype = compute_dtype
        self.out_dtype = out_dtype  # None -> follow x.dtype; pass bf16 if the consumer is bf16

        k_w, k_b = jax.random.split(key)
        fan_in = in_channels * patches_size * patches_size
        bound = 1.0 / (fan_in ** 0.5)
        # PyTorch Conv2d layout/init: weight (out_ch, in_ch, kH, kW); bias (out_ch,)
        self.weight = jax.random.uniform(
            k_w, (d_model, in_channels, patches_size, patches_size),
            dtype=jnp.float32, minval=-bound, maxval=bound)
        self.bias = jax.random.uniform(
            k_b, (d_model,), dtype=jnp.float32, minval=-bound, maxval=bound)

        # Precompute the matmul form of the conv weight/bias ONCE (not per call):
        # (D, C, P, P) -> (K, D), zero-padded to lane-dense (Kp, Dp).
        K, D = fan_in, d_model
        self.K = K
        self.Kp = _round_up(K, 128)
        self.Dp = _round_up(D, 128)
        w_mat = self.weight.reshape(D, K).T
        self._w_mat = jnp.pad(
            w_mat, ((0, self.Kp - K), (0, self.Dp - D))).astype(compute_dtype)
        self._b_mat = jnp.pad(
            self.bias, (0, self.Dp - D)).reshape(1, self.Dp).astype(jnp.float32)

    def __call__(self, x):
        # x: (B, C, H, W) NCHW; H % P == 0, W % P == 0 ('valid', stride == kernel)
        B, C, H, W = x.shape
        assert C == self.C and H % self.P == 0 and W % self.P == 0
        P, D = self.P, self.d_model
        hp, wp = H // P, W // P
        Np = hp * wp
        M, K, Kp, Dp = B * Np, self.K, self.Kp, self.Dp

        out_dtype = x.dtype if self.out_dtype is None else self.out_dtype
        vmem_cap = _vmem_cap_bytes()
        tm = _choose_tm(M, Kp, Dp,
                        jnp.dtype(self.compute_dtype).itemsize,
                        self._w_mat.dtype.itemsize,
                        jnp.dtype(out_dtype).itemsize,
                        vmem_cap)
        Mp = _round_up(M, tm)

        # --- layout glue: non-overlapping PxP patches in ONE transpose pass ---
        # (B, C, hp, P, wp, P) -> (B, hp, wp, C, P, P) -> (M, K).  Pad + cast
        # fuse into that pass under jit (and, via allow_input_fusion, ideally
        # into the kernel's input DMA).  Zero K-columns contribute nothing, so
        # the padded matmul is exact; padded M rows are sliced off below.
        # TODO(synk): in-kernel patch extraction (DMA native NCHW slabs) would
        # remove the remaining HBM pass but needs lane-relayout support.
        patches = x.reshape(B, C, hp, P, wp, P)
        patches = jnp.transpose(patches, (0, 2, 4, 1, 3, 5)).reshape(M, K)
        patches = jnp.pad(
            patches, ((0, Mp - M), (0, Kp - K))).astype(self.compute_dtype)

        # --- hot path: (Mp, Kp) @ (Kp, Dp) + bias, resident weight, f32 accumulate ---
        out = _patch_embed_matmul(patches, self._w_mat, self._b_mat,
                                  tm=tm, out_dtype=out_dtype, vmem_cap=vmem_cap)

        # Slice padding; (M, D) -> (B, num_patches, d_model) == flatten(2).transpose(1, 2)
        return out[:M, :D].reshape(B, Np, D)


def _reference(x, weight, bias, P):
    # Pure-JAX reference of the PyTorch forward (conv stride=kernel, valid).
    out = jax.lax.conv_general_dilated(
        x, weight, window_strides=(P, P), padding="VALID",
        dimension_numbers=("NCHW", "OIHW", "NCHW"))
    out = out + bias[None, :, None, None]
    B, D, hp, wp = out.shape
    return jnp.transpose(out.reshape(B, D, hp * wp), (0, 2, 1))


if __name__ == "__main__":
    key = jax.random.PRNGKey(0)
    k_param, k_x = jax.random.split(key)

    B, C, H, W = 2, 4, 16, 16
    P, d_model = 4, 32

    x = jax.random.normal(k_x, (B, C, H, W), dtype=jnp.float32)

    # f32 compute path: exact vs. the conv reference.
    emb_f32 = EmbeddingsPallas(d_model, P, in_channels=C, key=k_param,
                               compute_dtype=jnp.float32)
    ref = _reference(x, emb_f32.weight, emb_f32.bias, P)
    out_f32 = jax.block_until_ready(jax.jit(emb_f32.__call__)(x))
    assert out_f32.shape == (B, (H // P) * (W // P), d_model), out_f32.shape
    assert jnp.allclose(out_f32, ref, atol=1e-4, rtol=1e-4), float(
        jnp.max(jnp.abs(out_f32 - ref)))

    # Default bf16 compute path (MXU-native, halves patch HBM traffic); f32 accumulate.
    emb_bf16 = EmbeddingsPallas(d_model, P, in_channels=C, key=k_param)
    out_bf16 = jax.block_until_ready(jax.jit(emb_bf16.__call__)(x))
    assert out_bf16.shape == (B, (H // P) * (W // P), d_model), out_bf16.shape
    assert jnp.allclose(out_bf16, ref, atol=5e-2, rtol=5e-2), float(
        jnp.max(jnp.abs(out_bf16 - ref)))

    # TODO(synk): cnn=True path (3 same-padded convs + BatchNorm2d + ReLU) not
    # implemented; the default cnn=False forward path is what this covers.
    print("KERNEL_OK")
</pallas_src>

<mosaic_0001>
module attributes {stable_mosaic.version = 11 : i64} {
  func.func @_patch_embed_kernel(%arg0: i32, %arg1: memref<16x128xf32, #tpu.memory_space<vmem>>, %arg2: memref<128x128xf32, #tpu.memory_space<vmem>>, %arg3: memref<1x128xf32, #tpu.memory_space<vmem>>, %arg4: memref<16x128xf32, #tpu.memory_space<vmem>>) attributes {dimension_semantics = [#tpu.dimension_semantics<parallel>], iteration_bounds = array<i64: 2>, scalar_prefetch = 0 : i64, scratch_operands = 0 : i64, tpu.core_type = #tpu.core_type<tc>, window_params = [{transform_indices = @transform_0, window_bounds = array<i64: 16, 128>}, {pipeline_mode = #tpu.pipeline_mode<synchronous>, transform_indices = @transform_1, window_bounds = array<i64: 128, 128>}, {pipeline_mode = #tpu.pipeline_mode<synchronous>, transform_indices = @transform_2, window_bounds = array<i64: 1, 128>}, {transform_indices = @transform_3, window_bounds = array<i64: 16, 128>}]} {
    %c0 = arith.constant 0 : index
    %c0_0 = arith.constant 0 : index
    %0 = vector.load %arg1[%c0, %c0_0] : memref<16x128xf32, #tpu.memory_space<vmem>>, vector<16x128xf32>
    %c0_1 = arith.constant 0 : index
    %c0_2 = arith.constant 0 : index
    %1 = vector.load %arg2[%c0_1, %c0_2] : memref<128x128xf32, #tpu.memory_space<vmem>>, vector<128x128xf32>
    %cst = arith.constant dense<0.000000e+00> : vector<16x128xf32>
    %2 = tpu.matmul %0, %1, %cst {dimension_numbers = #tpu.dot_dimension_numbers<[1], [0], [0], [1], [0, 0, 1, 1], [], []>} : vector<16x128xf32>, vector<128x128xf32>, vector<16x128xf32> -> vector<16x128xf32>
    %c0_3 = arith.constant 0 : index
    %c0_4 = arith.constant 0 : index
    %3 = vector.load %arg3[%c0_3, %c0_4] : memref<1x128xf32, #tpu.memory_space<vmem>>, vector<1x128xf32>
    %4 = vector.broadcast %3 : vector<1x128xf32> to vector<16x128xf32>
    %5 = arith.addf %2, %4 : vector<16x128xf32>
    %c0_5 = arith.constant 0 : index
    %c0_6 = arith.constant 0 : index
    %6 = vector.load %arg4[%c0_5, %c0_6] : memref<16x128xf32, #tpu.memory_space<vmem>>, vector<16x128xf32>
    tpu.vector_store %arg4[%c0_5, %c0_6], %5 {strides = array<i32>} : memref<16x128xf32, #tpu.memory_space<vmem>>, vector<16x128xf32>,
    return
  }
  func.func @transform_0(%arg0: i32) -> (i32, i32) {
    %c0_i32 = arith.constant 0 : i32
    %c0_i32_0 = arith.constant 0 : i32
    return %arg0, %c0_i32 : i32, i32
  }
  func.func @transform_1(%arg0: i32) -> (i32, i32) {
    %c0_i32 = arith.constant 0 : i32
    %c0_i32_0 = arith.constant 0 : i32
    %c0_i32_1 = arith.constant 0 : i32
    return %c0_i32, %c0_i32_0 : i32, i32
  }
  func.func @transform_2(%arg0: i32) -> (i32, i32) {
    %c0_i32 = arith.constant 0 : i32
    %c0_i32_0 = arith.constant 0 : i32
    %c0_i32_1 = arith.constant 0 : i32
    return %c0_i32, %c0_i32_0 : i32, i32
  }
  func.func @transform_3(%arg0: i32) -> (i32, i32) {
    %c0_i32 = arith.constant 0 : i32
    %c0_i32_0 = arith.constant 0 : i32
    return %arg0, %c0_i32 : i32, i32
  }
}

</mosaic_0001>

<llo_original>
// kernel: a_call__.2
$region0: #{a_call__.2}
  #allocation0 [shape = 'u32[]', space=smem, size = 0x4, offset = 0x4, fixed_abs, tag = 'smem constant byte address 0x4 - core index']
  #allocation1 [shape = 'u32[144,128]{1,0:T(1,128)}', space=vmem, size = 0x12000, scoped, tag = 'internal scratch']
  #allocation2 [shape = 'u32[2048]{0}', space=vmem, size = 0x2000, scoped, tag = 'scoped memory for a_call__.2']
  #allocation3 [shape = 'u32[2048]{0}', space=vmem, size = 0x2000, scoped, tag = 'scoped memory for a_call__.2']
  #allocation4 [shape = 'u32[2048]{0}', space=vmem, size = 0x2000, scoped, tag = 'scoped memory for a_call__.2']
  #allocation5 [shape = 'u32[2048]{0}', space=vmem, size = 0x2000, scoped, tag = 'scoped memory for a_call__.2']
  #allocation6 [shape = 'u32[2048]{0}', space=vmem, size = 0x2000, scoped, tag = 'scoped memory for a_call__.2']
  %s0 = inlined_call_operand.vmem [shape: f32[128,128], index: 0, kind: input, shape index: {}]
  %s1 = inlined_call_operand.vmem [shape: f32[1,128], index: 1, kind: input, shape index: {}]
  %s2 = inlined_call_operand.vmem [shape: f32[32,64], index: 2, kind: input, shape index: {}]
  %s3 = inlined_call_operand.<no memory space> [shape: f32[], index: 3, kind: input, shape index: {}]
  %s4 = inlined_call_operand.hbm [shape: f32[32,128], index: 4, kind: output, shape index: {}]
  %s5 = sld [smem:[#allocation0]]
  $region45: #{a_call__.2} parent=0
    _
  %s7 = ssub.s32 1, %s5
  %s8 = scalar_select 0, %s7, %s5
  %v9 = vstv %s3
  $region1: #{a_call__.2} parent=0
    #allocation7 [shape = 'u8[16384]{0}', space=vmem, size = 0x4000, scoped, tag = 'output window, operand 0']
    #allocation8 [shape = 's32[2]{0}', space=sflag, size = 0x8, scoped, tag = 'scoped memory for a_call__.2']
    %10 = vsyncpa [#allocation8], 0
    %s11 = scalar_lea.sflag [#allocation8], 1
    %12 = vsyncpa %s11, 0
    loop: start=0, step=1, limit=4
    $region2: #{a_call__.2} parent=1 // loop_pre_header
      _
    $region3: #{a_call__.2} parent=1 // loop_header
      %s14 = sphi 0, %s18
      %p15 = scmp.ge.s32.totalorder %s14, 4
      %s24 = sphi 0, %s26
      %s27 = sphi 0, %s24
      %s28 = sphi 0, %s27
      %s44 = sphi 0, %s28
      %s48 = sphi 0, %s48
      %s50 = sphi 0, %s48
      %s51 = sphi 0, %s50
      %s65 = sphi 0, %s51
      %s69 = sphi 0, %s69
      %s71 = sphi 0, %s69
      %s72 = sphi 0, %s71
      %s86 = sphi 0, %s72
      %s92 = sphi 0, %s94
      %s95 = sphi 0, %s92
      %s96 = sphi 0, %s95
      %s112 = sphi 0, %s96
    $region4: #{a_call__.2} parent=1 // loop_header_branch
      %17 = sbr.rel (%p15) target = $region8
    $region5: #{a_call__.2} parent=1 // loop_body
      %s19 = ssub.s32 %s14, 1
      %s20 = ssub.s32 %s14, 2
      %s21 = sadd.s32 %s14, 1
      %s22 = ssub.s32 %s14, %s21
      %p23 = scmp.eq.s32.totalorder %s22, 0
      %s25 = sadd.s32 %s24, 1
      %s26 = scalar_select %p23, %s24, %s25
      %p29 = pneg %p23
      %p30 = scmp.eq.s32.totalorder %s14, 1
      %p31 = por %p29, %p30
      %p32 = scmp.ne.s32.totalorder %s24, %s27
      %p33 = scmp.eq.s32.totalorder %s14, 0
      %p34 = por %p32, %p33
      %p35 = scmp.ne.s32.totalorder %s24, %s27
      %p36 = scmp.eq.s32.totalorder %s19, 1
      %p37 = por %p35, %p36
      %p38 = scmp.ne.s32.totalorder %s27, %s28
      %p39 = scmp.eq.s32.totalorder %s19, 0
      %p40 = por %p38, %p39
      %p41 = scmp.ne.s32.totalorder %s27, %s28
      %p42 = scmp.eq.s32.totalorder %s20, 1
      %p43 = por %p41, %p42
      %p45 = scmp.ne.s32.totalorder %s28, %s44
      %p46 = scmp.eq.s32.totalorder %s20, 0
      %p47 = por %p45, %p46
      %s49 = sadd.s32 %s48, 1
      %p52 = scmp.eq.s32.totalorder %s14, 1
      %p53 = scmp.ne.s32.totalorder %s48, %s50
      %p54 = scmp.eq.s32.totalorder %s14, 0
      %p55 = por %p53, %p54
      %p56 = scmp.ne.s32.totalorder %s48, %s50
      %p57 = scmp.eq.s32.totalorder %s19, 1
      %p58 = por %p56, %p57
      %p59 = scmp.ne.s32.totalorder %s50, %s51
      %p60 = scmp.eq.s32.totalorder %s19, 0
      %p61 = por %p59, %p60
      %p62 = scmp.ne.s32.totalorder %s50, %s51
      %p63 = scmp.eq.s32.totalorder %s20, 1
      %p64 = por %p62, %p63
      %p66 = scmp.ne.s32.totalorder %s51, %s65
      %p67 = scmp.eq.s32.totalorder %s20, 0
      %p68 = por %p66, %p67
      %s70 = sadd.s32 %s69, 1
      %p73 = scmp.eq.s32.totalorder %s14, 1
      %p74 = scmp.ne.s32.totalorder %s69, %s71
      %p75 = scmp.eq.s32.totalorder %s14, 0
      %p76 = por %p74, %p75
      %p77 = scmp.ne.s32.totalorder %s69, %s71
      %p78 = scmp.eq.s32.totalorder %s19, 1
      %p79 = por %p77, %p78
      %p80 = scmp.ne.s32.totalorder %s71, %s72
      %p81 = scmp.eq.s32.totalorder %s19, 0
      %p82 = por %p80, %p81
      %p83 = scmp.ne.s32.totalorder %s71, %s72
      %p84 = scmp.eq.s32.totalorder %s20, 1
      %p85 = por %p83, %p84
      %p87 = scmp.ne.s32.totalorder %s72, %s86
      %p88 = scmp.eq.s32.totalorder %s20, 0
      %p89 = por %p87, %p88
      %s90 = ssub.s32 %s14, %s21
      %p91 = scmp.eq.s32.totalorder %s90, 0
      %s93 = sadd.s32 %s92, 1
      %s94 = scalar_select %p91, %s92, %s93
      %p97 = pneg %p91
      %p98 = scmp.eq.s32.totalorder %s14, 1
      %p99 = por %p97, %p98
      %p100 = scmp.ne.s32.totalorder %s92, %s95
      %p101 = scmp.eq.s32.totalorder %s14, 0
      %p102 = por %p100, %p101
      %p103 = scmp.ne.s32.totalorder %s92, %s95
      %p104 = scmp.eq.s32.totalorder %s19, 1
      %p105 = por %p103, %p104
      %p106 = scmp.ne.s32.totalorder %s95, %s96
      %p107 = scmp.eq.s32.totalorder %s19, 0
      %p108 = por %p106, %p107
      %p109 = scmp.ne.s32.totalorder %s95, %s96
      %p110 = scmp.eq.s32.totalorder %s20, 1
      %p111 = por %p109, %p110
      %p113 = scmp.ne.s32.totalorder %s96, %s112
      %p114 = scmp.eq.s32.totalorder %s20, 0
      %p115 = por %p113, %p114
      %p116 = scmp.le.s32.totalorder 1, %s14
      %p117 = scmp.lt.s32.totalorder %s14, 3
      %p118 = pnand %p116, %p117
      %p119 = pneg %p118
      // Predicated region
      $region9: #{a_call__.2} parent=5 // pred_check
        _
      $region10: #{a_call__.2} parent=5 // pred_check_branch
        %121 = sbr.rel (%p118) target = $region12
      $region11: #{a_call__.2} parent=5 // pred_region
        %s122 = ssub.s32 %s14, 1
        // Predicated region
        $region13: #{a_call__.2} parent=11 // pred_check
          %p123 = pneg %p61
        $region14: #{a_call__.2} parent=11 // pred_check_branch
          %125 = sbr.rel (%p123) target = $region16
        $region15: #{a_call__.2} parent=11 // pred_region
          _
        $region16: #{a_call__.2} parent=11 // pred_fallthru
          _
        // Predicated region
        $region17: #{a_call__.2} parent=11 // pred_check
          %p126 = pneg %p82
        $region18: #{a_call__.2} parent=11 // pred_check_branch
          %128 = sbr.rel (%p126) target = $region20
        $region19: #{a_call__.2} parent=11 // pred_region
          _
        $region20: #{a_call__.2} parent=11 // pred_fallthru
          _
      $region12: #{a_call__.2} parent=5 // pred_fallthru
        _
      %p129 = scmp.lt.s32.totalorder %s14, 2
      // Predicated region
      $region21: #{a_call__.2} parent=5 // pred_check
        %p130 = pneg %p129
      $region22: #{a_call__.2} parent=5 // pred_check_branch
        %132 = sbr.rel (%p130) target = $region24
      $region23: #{a_call__.2} parent=5 // pred_region
        // Predicated region
        $region25: #{a_call__.2} parent=23 // pred_check
          %p133 = pneg %p34
        $region26: #{a_call__.2} parent=23 // pred_check_branch
          %135 = sbr.rel (%p133) target = $region28
        $region27: #{a_call__.2} parent=23 // pred_region
          %s136 = smul.u32 2, %s14
          %p137 = scmp.lt.s32.totalorder %s136, 3
          %s138 = scalar_select %p137, %s136, 3
          %s139 = smul.addr %s138, 8
          %s140 = scalar_lea.vmem %s2, %s139
          %s141 = smul.u32 2, %s14
        $region28: #{a_call__.2} parent=23 // pred_fallthru
          _
      $region24: #{a_call__.2} parent=5 // pred_fallthru
        _
      %p142 = scmp.le.s32.totalorder 1, %s14
      %p143 = scmp.lt.s32.totalorder %s14, 3
      %p144 = pnand %p142, %p143
      %p145 = pneg %p144
      // Predicated region
      $region29: #{a_call__.2} parent=5 // pred_check
        _
      $region30: #{a_call__.2} parent=5 // pred_check_branch
        %147 = sbr.rel (%p144) target = $region32
      $region31: #{a_call__.2} parent=5 // pred_region
        #allocation9 [shape = 'u8[8192]{0}', space=vmem, size = 0x2000, dematerialized = true, scoped, tag = 'FusionAdapter Buffer %fusion.1 = f32[32,128]{1,0:T(8,128)} fusion(%param_2.1, %param_3), kind=kLoop, calls=%fused_computation.2.clone, metadata={op_name="jit(__call__)/jit(_pad)/pad" stack_frame_id=9}']
        %s148 = ssub.s32 %s14, 1
        %s149 = smul.u32 2, %s19
        %p150 = scmp.lt.s32.totalorder %s149, 3
        %s151 = scalar_select %p150, %s149, 3
        %s152 = smul.addr %s151, 8
        %s153 = scalar_lea.vmem %s2, %s152
        %p154 = pneg %p40
        %p155 = pneg %p37
        %p156 = pneg %p61
        %p157 = pneg %p58
        %p158 = pneg %p82
        %p159 = pneg %p79
        %p160 = pneg %p108
        %p161 = pneg %p105
        %s162 = sand.u32 %s95, 1
        %s163 = scalar_lea.sflag [#allocation8], %s162
        %s164 = sand.u32 %s95, 1
        %s165 = smul.addr %s164, 16
        %s166 = scalar_lea.vmem [#allocation7], %s165
        %s167 = smul.u32 2, %s19
        %p168 = scmp.lt.s32.totalorder %s167, 3
        %s169 = scalar_select %p168, %s167, 3
        %s170 = smul.addr %s169, 8
        %s171 = scalar_lea.vmem %s2, %s170
        %s172 = smul.u32 2, %s19
        %s173 = smul.u32 2, %s19
        %v174 = vld [vmem:[%s171] sm:$0xff]
        %v175 = vlaneseq
        %v176 = vand.u32 %v175, 127
        %vm178 = vcmp.lt.s32.totalorder %v176, 64
        %v179 = vsel %vm178, %v174, %v9
        %s181 = ssub.s32 256, 1
        %182 = vst [vmem:[#allocation9] sm:%s181] %v179
        %s183 = scalar_lea.vmem %s171, 8
        %v184 = vld [vmem:[%s183] sm:$0xff]
        %v185 = vlaneseq
        %v186 = vand.u32 %v185, 127
        %vm188 = vcmp.lt.s32.totalorder %v186, 64
        %v189 = vsel %vm188, %v184, %v9
        %s190 = scalar_lea.vmem [#allocation9], 8
        %s192 = ssub.s32 256, 1
        %193 = vst [vmem:[%s190] sm:%s192] %v189
        %v194 = vld [vmem:[#allocation9] sm:$0xff]
        %v195 = vld [vmem:[#allocation9 + $0x8] sm:$0xff]
        %v196 = vld [vmem:[%s0] sm:$0xff]
        %v197 = vld [vmem:[%s0 + $0x8] sm:$0xff]
        %v198 = vld [vmem:[%s0 + $0x10] sm:$0xff]
        %v199 = vld [vmem:[%s0 + $0x18] sm:$0xff]
        %v200 = vld [vmem:[%s0 + $0x20] sm:$0xff]
        %v201 = vld [vmem:[%s0 + $0x28] sm:$0xff]
        %v202 = vld [vmem:[%s0 + $0x30] sm:$0xff]
        %v203 = vld [vmem:[%s0 + $0x38] sm:$0xff]
        %v204 = vld [vmem:[%s0 + $0x40] sm:$0xff]
        %v205 = vld [vmem:[%s0 + $0x48] sm:$0xff]
        %v206 = vld [vmem:[%s0 + $0x50] sm:$0xff]
        %v207 = vld [vmem:[%s0 + $0x58] sm:$0xff]
        %v208 = vld [vmem:[%s0 + $0x60] sm:$0xff]
        %v209 = vld [vmem:[%s0 + $0x68] sm:$0xff]
        %v210 = vld [vmem:[%s0 + $0x70] sm:$0xff]
        %v211 = vld [vmem:[%s0 + $0x78] sm:$0xff]
        %v212 = vld [vmem:[%s1] sm:$0x1]
        %v214 = vlaneseq
        %v215 = vshrl.u32 %v214, 7
        %v216 = vsub.s32 0, %v215
        %v217 = vrot.slane %v212, %v216
        %219 = vmatprep.subr.mxu0 0.0
        %220 = vmatpush1.msra.mxu0 %v211
        %221 = vmatprep.subr.mxu0 0.0
        %222 = vmatpush1.msra.mxu0 %v210
        %223 = vmatprep.subr.mxu0 0.0
        %224 = vmatpush1.msra.mxu0 %v209
        %225 = vmatprep.subr.mxu0 0.0
        %226 = vmatpush1.msra.mxu0 %v208
        %227 = vmatprep.subr.mxu0 0.0
        %228 = vmatpush1.msra.mxu0 %v207
        %229 = vmatprep.subr.mxu0 0.0
        %230 = vmatpush1.msra.mxu0 %v206
        %231 = vmatprep.subr.mxu0 0.0
        %232 = vmatpush1.msra.mxu0 %v205
        %233 = vmatprep.subr.mxu0 0.0
        %234 = vmatpush1.msra.mxu0 %v204
        %235 = vmatprep.subr.mxu0 0.0
        %236 = vmatpush1.msra.mxu0 %v203
        %237 = vmatprep.subr.mxu0 0.0
        %238 = vmatpush1.msra.mxu0 %v202
        %239 = vmatprep.subr.mxu0 0.0
        %240 = vmatpush1.msra.mxu0 %v201
        %241 = vmatprep.subr.mxu0 0.0
        %242 = vmatpush1.msra.mxu0 %v200
        %243 = vmatprep.subr.mxu0 0.0
        %244 = vmatpush1.msra.mxu0 %v199
        %245 = vmatprep.subr.mxu0 0.0
        %246 = vmatpush1.msra.mxu0 %v198
        %247 = vmatprep.subr.mxu0 0.0
        %248 = vmatpush1.msra.mxu0 %v197
        %249 = vmatprep.subr.mxu0 0.0
        %250 = vmatpush1.msra.mxu0 %v196
        %251 = vmatprep.subr.mxu0 0.0
        %252 = vmatpush2.msra.mxu0 0.0
        %253 = vmatprep.subr.mxu0 0.0
        %254 = vmatpush2.msra.mxu0 0.0
        %255 = vmatprep.subr.mxu0 0.0
        %256 = vmatpush2.msra.mxu0 0.0
        %257 = vmatprep.subr.mxu0 0.0
        %258 = vmatpush2.msra.mxu0 0.0
        %259 = vmatprep.subr.mxu0 0.0
        %260 = vmatpush2.msra.mxu0 0.0
        %261 = vmatprep.subr.mxu0 0.0
        %262 = vmatpush2.msra.mxu0 0.0
        %263 = vmatprep.subr.mxu0 0.0
        %264 = vmatpush2.msra.mxu0 0.0
        %265 = vmatprep.subr.mxu0 0.0
        %266 = vmatpush2.msra.mxu0 0.0
        %267 = vmatprep.subr.mxu0 0.0
        %268 = vmatpush2.msra.mxu0 0.0
        %269 = vmatprep.subr.mxu0 0.0
        %270 = vmatpush2.msra.mxu0 0.0
        %271 = vmatprep.subr.mxu0 0.0
        %272 = vmatpush2.msra.mxu0 0.0
        %273 = vmatprep.subr.mxu0 0.0
        %274 = vmatpush2.msra.mxu0 0.0
        %275 = vmatprep.subr.mxu0 0.0
        %276 = vmatpush2.msra.mxu0 0.0
        %277 = vmatprep.subr.mxu0 0.0
        %278 = vmatpush2.msra.mxu0 0.0
        %279 = vmatprep.subr.mxu0 0.0
        %280 = vmatpush2.msra.mxu0 0.0
        %281 = vmatprep.subr.mxu0 0.0
        %282 = vmatpush2.msra.mxu0 0.0
        %283 = vmatprep.mubr.f32.mxu0 0.0
        %284 = vmatmul.mubr.f32.gmra.mxu0 %v194
        %v285 = vpop.f32.mrf.mxu0
        %v286 = vadd.f32 %v217, %v285
        %v287 = vpop.f32.mrf.mxu0
        %288 = vmatprep.mubr.f32.mxu0 0.0
        %289 = vmatmul.mubr.f32.gmra.mxu0 %v195
        %v290 = vpop.f32.mrf.mxu0
        %v291 = vadd.f32 %v217, %v290
        %v292 = vpop.f32.mrf.mxu0
        %293 = vdwg.mxu0
        %294 = vst [vmem:[%s166] sm:$0xff] %v286
        %295 = vst [vmem:[%s166 + $0x8] sm:$0xff] %v291
        %s296 = sand.u32 %s95, 1
        %s297 = scalar_lea.sflag [#allocation8], %s296
        %s298 = sand.u32 %s95, 1
        %s299 = smul.addr %s298, 16
        %s300 = scalar_lea.vmem [#allocation7], %s299
        // Predicated region
        $region33: #{a_call__.2} parent=31 // pred_check
          %p301 = pneg %p105
        $region34: #{a_call__.2} parent=31 // pred_check_branch
          %303 = sbr.rel (%p301) target = $region36
        $region35: #{a_call__.2} parent=31 // pred_region
          %s304 = smul.u32 2, %s19
          %s306 = ssub.s32 256, 256
          %307 = vsyncadd %s297, %s306
          %s308 = smul.addr %s304, 128
          %s309 = scalar_lea.hbm %s4, %s308
          %s310 = sshll.u32 %s300, 4
          %s311 = int_to_ptr.vmem [resolvable:$true] %s310
          %316 = dma.vmem_to_hbm [thread:$0]  %s311, 256, %s309, %s297, 128, 128, 8
        $region36: #{a_call__.2} parent=31 // pred_fallthru
          _
      $region32: #{a_call__.2} parent=5 // pred_fallthru
        _
      %p317 = scmp.le.s32.totalorder 2, %s14
      // Predicated region
      $region37: #{a_call__.2} parent=5 // pred_check
        %p318 = pneg %p317
      $region38: #{a_call__.2} parent=5 // pred_check_branch
        %320 = sbr.rel (%p318) target = $region40
      $region39: #{a_call__.2} parent=5 // pred_region
        %s321 = ssub.s32 %s14, 2
        // Predicated region
        $region41: #{a_call__.2} parent=39 // pred_check
          %p322 = pneg %p111
        $region42: #{a_call__.2} parent=39 // pred_check_branch
          %324 = sbr.rel (%p322) target = $region44
        $region43: #{a_call__.2} parent=39 // pred_region
          %s325 = sand.u32 %s96, 1
          %s326 = scalar_lea.sflag [#allocation8], %s325
          %s327 = sand.u32 %s96, 1
          %s328 = smul.addr %s327, 16
          %s329 = scalar_lea.vmem [#allocation7], %s328
          %330 = dma.done %s326, 256
        $region44: #{a_call__.2} parent=39 // pred_fallthru
          _
      $region40: #{a_call__.2} parent=5 // pred_fallthru
        _
    $region6: #{a_call__.2} parent=1 // loop_footer
      %s18 = sadd.s32 1, %s14
    $region7: #{a_call__.2} parent=1 // loop_footer_branch
      %13 = sbr.rel target = $region3
    $region8: #{a_call__.2} parent=1 // loop_exit
      _
    %331 = vsyncpa [#allocation8], 1
    %s332 = scalar_lea.sflag [#allocation8], 1
    %333 = vsyncpa %s332, 1

</llo_original>
